<compile_context>
chip_gen: v6e
topology: v6e:2x2x1
jax: 0.10.0
libtpu: 0.0.40
codegen_flags: <defaults>
</compile_context>

<pallas_src>
import functools

import jax
import jax.numpy as jnp
from jax.experimental import pallas as pl
from jax.experimental.pallas import tpu as pltpu

_LANES = 128
_MAX_BLOCK_ROWS = 2048   # 1 MiB per f32 input block


def _sse_kernel(o_ref, t_ref, out_ref, *, rows, block_rows, blocks_per_core,
                needs_mask):
    # out_ref: (1, 1, 128) per-lane partial sum of squared errors, resident in
    # VMEM across the inner ("arbitrary") grid axis.
    i = pl.program_id(0)   # core-split axis ("parallel")
    j = pl.program_id(1)   # streaming/reduction axis ("arbitrary")

    @pl.when(j == 0)
    def _():
        out_ref[...] = jnp.zeros_like(out_ref)

    d = o_ref[...].astype(jnp.float32) - t_ref[...].astype(jnp.float32)
    dd = d * d

    if needs_mask:
        # Logical block index. The DMA index_map clamps to stay in-bounds;
        # duplicated / partial boundary blocks are zeroed out here.
        b = i * blocks_per_core + j
        valid = rows - b * block_rows            # may be <= 0 or < block_rows
        row_idx = jax.lax.broadcasted_iota(jnp.int32, dd.shape, 0)
        dd = jnp.where(row_idx < valid, dd, 0.0)

    out_ref[...] += jnp.sum(dd, axis=0, keepdims=True)[None, :, :]


def psnr(output: jax.Array, target: jax.Array, val_range: float = 1.0) -> jax.Array:
    # check_shape_dtype semantics.
    if output.dtype != target.dtype:
        raise TypeError(f"Got output: {output.dtype} and target: {target.dtype}.")
    if output.shape != target.shape:
        raise ValueError(f"Got output: {output.shape} and target: {target.shape}.")
    total_n = output.size
    if total_n == 0:
        raise ValueError("PSNR of empty tensors is undefined.")

    flat_o = output.reshape(-1)
    flat_t = target.reshape(-1)

    # Lane padding only when total_n is not a multiple of 128 (rare for image
    # tensors). Padding zeros contribute 0 to the squared-error sum.
    rem = total_n % _LANES
    if rem:
        pad = _LANES - rem
        flat_o = jnp.pad(flat_o, (0, pad))
        flat_t = jnp.pad(flat_t, (0, pad))
    rows = flat_o.size // _LANES

    o2d = flat_o.reshape(rows, _LANES)
    t2d = flat_t.reshape(rows, _LANES)

    # Block sizing: full array if small, otherwise 2048 rows (1 MiB per f32
    # input block; multiple of 8/16/32 so f32/bf16/int8 tiles stay aligned).
    block_rows = rows if rows <= _MAX_BLOCK_ROWS else _MAX_BLOCK_ROWS
    n_blocks = pl.cdiv(rows, block_rows)
    num_cores = 2 if n_blocks >= 2 else 1
    blocks_per_core = pl.cdiv(n_blocks, num_cores)
    # Mask needed if the last real block is partial or the core split over-runs.
    needs_mask = (rows % block_rows != 0) or (num_cores * blocks_per_core != n_blocks)

    def in_index_map(i, j):
        b = i * blocks_per_core + j
        # Clamp so duplicated trailing blocks DMA in-bounds data (they are
        # masked to zero contribution inside the kernel).
        return (jnp.minimum(b, n_blocks - 1), 0)

    kernel = functools.partial(
        _sse_kernel,
        rows=rows,
        block_rows=block_rows,
        blocks_per_core=blocks_per_core,
        needs_mask=needs_mask,
    )

    partial_sse = pl.pallas_call(
        kernel,
        out_shape=jax.ShapeDtypeStruct((num_cores, 1, _LANES), jnp.float32),
        grid_spec=pltpu.PrefetchScalarGridSpec(
            num_scalar_prefetch=0,
            grid=(num_cores, blocks_per_core),
            in_specs=[
                pl.BlockSpec((block_rows, _LANES), in_index_map),
                pl.BlockSpec((block_rows, _LANES), in_index_map),
            ],
            out_specs=pl.BlockSpec((1, 1, _LANES), lambda i, j: (i, 0, 0)),
        ),
        compiler_params=pltpu.CompilerParams(
            dimension_semantics=("parallel", "arbitrary"),
        ),
    )(o2d, t2d)

    # Tiny epilogue in plain JAX: combine per-core / per-lane partial sums and
    # apply mse -> PSNR in f32.
    sse = jnp.sum(partial_sse)
    mse = sse / total_n
    scale = jnp.float32(float(val_range) * float(val_range))
    psnr_val = 10.0 * jnp.log10(scale / (mse + jnp.float32(1e-10)))

    # torch returns a floating scalar; avoid truncation for integer image dtypes.
    out_dtype = output.dtype if jnp.issubdtype(output.dtype, jnp.floating) else jnp.float32
    return psnr_val.astype(out_dtype)


def _psnr_ref(x, y, val_range=1.0):
    mse = jnp.mean((x.astype(jnp.float32) - y.astype(jnp.float32)) ** 2)
    return jnp.sum(10.0 * jnp.log10(jnp.float32(val_range) ** 2 / (mse + 1e-10)))


if __name__ == "__main__":
    key = jax.random.PRNGKey(0)

    # Small case (single block, single core): NCHW = (2, 4, 16, 16).
    k1, k2 = jax.random.split(key)
    x = jax.random.uniform(k1, (2, 4, 16, 16), dtype=jnp.float32)
    y = jax.random.uniform(k2, (2, 4, 16, 16), dtype=jnp.float32)
    got = psnr(x, y, val_range=1.0)
    jax.block_until_ready(got)
    want = _psnr_ref(x, y, 1.0)
    assert jnp.allclose(got, want, rtol=1e-4, atol=1e-4), (got, want)

    # Larger case exercising multi-block streaming, the 2-way core split and the
    # partial-last-block mask: (2, 8, 160, 160) -> 3200 rows of 128 lanes.
    k3, k4 = jax.random.split(k1)
    x2 = jax.random.uniform(k3, (2, 8, 160, 160), dtype=jnp.float32)
    y2 = jax.random.uniform(k4, (2, 8, 160, 160), dtype=jnp.float32)
    got2 = psnr(x2, y2, val_range=2.0)
    jax.block_until_ready(got2)
    want2 = _psnr_ref(x2, y2, 2.0)
    assert jnp.allclose(got2, want2, rtol=1e-4, atol=1e-4), (got2, want2)

    print("KERNEL_OK")
</pallas_src>

<mosaic_0001>
module attributes {stable_mosaic.version = 11 : i64} {
  func.func @_sse_kernel(%arg0: i32, %arg1: i32, %arg2: memref<16x128xf32, #tpu.memory_space<vmem>>, %arg3: memref<16x128xf32, #tpu.memory_space<vmem>>, %arg4: memref<1x1x128xf32, #tpu.memory_space<vmem>>) attributes {dimension_semantics = [#tpu.dimension_semantics<parallel>, #tpu.dimension_semantics<arbitrary>], iteration_bounds = array<i64: 1, 1>, scalar_prefetch = 0 : i64, scratch_operands = 0 : i64, tpu.core_type = #tpu.core_type<tc>, window_params = [{transform_indices = @transform_0, window_bounds = array<i64: 16, 128>}, {transform_indices = @transform_1, window_bounds = array<i64: 16, 128>}, {transform_indices = @transform_2, window_bounds = array<i64: 1, 1, 128>}]} {
    %c0_i32 = arith.constant 0 : i32
    %0 = arith.cmpi eq, %arg1, %c0_i32 : i32
    %1 = arith.extui %0 : i1 to i32
    %c0_i32_0 = arith.constant 0 : i32
    %2 = arith.cmpi ne, %1, %c0_i32_0 : i32
    scf.if %2 {
      %cst_10 = arith.constant 0.000000e+00 : f32
      %13 = vector.broadcast %cst_10 : f32 to vector<1x1x128xf32>
      %c0_11 = arith.constant 0 : index
      %c0_12 = arith.constant 0 : index
      %c0_13 = arith.constant 0 : index
      %14 = vector.load %arg4[%c0_11, %c0_12, %c0_13] : memref<1x1x128xf32, #tpu.memory_space<vmem>>, vector<1x1x128xf32>
      tpu.vector_store %arg4[%c0_11, %c0_12, %c0_13], %13 {strides = array<i32>} : memref<1x1x128xf32, #tpu.memory_space<vmem>>, vector<1x1x128xf32>,
    } else {
    }
    %c0 = arith.constant 0 : index
    %c0_1 = arith.constant 0 : index
    %3 = vector.load %arg2[%c0, %c0_1] : memref<16x128xf32, #tpu.memory_space<vmem>>, vector<16x128xf32>
    %c0_2 = arith.constant 0 : index
    %c0_3 = arith.constant 0 : index
    %4 = vector.load %arg3[%c0_2, %c0_3] : memref<16x128xf32, #tpu.memory_space<vmem>>, vector<16x128xf32>
    %5 = arith.subf %3, %4 : vector<16x128xf32>
    %6 = arith.mulf %5, %5 : vector<16x128xf32>
    %c0_4 = arith.constant 0 : index
    %c0_5 = arith.constant 0 : index
    %c0_6 = arith.constant 0 : index
    %7 = vector.load %arg4[%c0_4, %c0_5, %c0_6] : memref<1x1x128xf32, #tpu.memory_space<vmem>>, vector<1x1x128xf32>
    %cst = arith.constant dense<0.000000e+00> : vector<128xf32>
    %8 = vector.multi_reduction <add>, %6, %cst [0] : vector<16x128xf32> to vector<128xf32>
    %9 = vector.shape_cast %8 : vector<128xf32> to vector<1x128xf32>
    %10 = vector.shape_cast %9 : vector<1x128xf32> to vector<1x1x128xf32>
    %11 = arith.addf %7, %10 : vector<1x1x128xf32>
    %c0_7 = arith.constant 0 : index
    %c0_8 = arith.constant 0 : index
    %c0_9 = arith.constant 0 : index
    %12 = vector.load %arg4[%c0_7, %c0_8, %c0_9] : memref<1x1x128xf32, #tpu.memory_space<vmem>>, vector<1x1x128xf32>
    tpu.vector_store %arg4[%c0_7, %c0_8, %c0_9], %11 {strides = array<i32>} : memref<1x1x128xf32, #tpu.memory_space<vmem>>, vector<1x1x128xf32>,
    return
  }
  func.func @transform_0(%arg0: i32, %arg1: i32) -> (i32, i32) {
    %c1_i32 = arith.constant 1 : i32
    %0 = arith.muli %arg0, %c1_i32 : i32
    %1 = arith.addi %0, %arg1 : i32
    %c0_i32 = arith.constant 0 : i32
    %2 = arith.minsi %1, %c0_i32 : i32
    %c0_i32_0 = arith.constant 0 : i32
    %c0_i32_1 = arith.constant 0 : i32
    return %2, %c0_i32_0 : i32, i32
  }
  func.func @transform_1(%arg0: i32, %arg1: i32) -> (i32, i32) {
    %c1_i32 = arith.constant 1 : i32
    %0 = arith.muli %arg0, %c1_i32 : i32
    %1 = arith.addi %0, %arg1 : i32
    %c0_i32 = arith.constant 0 : i32
    %2 = arith.minsi %1, %c0_i32 : i32
    %c0_i32_0 = arith.constant 0 : i32
    %c0_i32_1 = arith.constant 0 : i32
    return %2, %c0_i32_0 : i32, i32
  }
  func.func @transform_2(%arg0: i32, %arg1: i32) -> (i32, i32, i32) {
    %c0_i32 = arith.constant 0 : i32
    %c0_i32_0 = arith.constant 0 : i32
    %c0_i32_1 = arith.constant 0 : i32
    return %arg0, %c0_i32, %c0_i32_0 : i32, i32, i32
  }
}

</mosaic_0001>

<llo_original>
// kernel: tpu_custom_call.1
$region0: #{tpu_custom_call.1}
  #allocation0 [shape = 'u32[]', space=smem, size = 0x4, offset = 0x4, fixed_abs, tag = 'smem constant byte address 0x4 - core index']
  #allocation1 [shape = 'u32[144,128]{1,0:T(1,128)}', space=vmem, size = 0x12000, scoped, tag = 'internal scratch']
  %s0 = inlined_call_operand.hbm [shape: f32[16,128], index: 0, kind: input, shape index: {}]
  %s1 = inlined_call_operand.hbm [shape: f32[16,128], index: 1, kind: input, shape index: {}]
  %s2 = inlined_call_operand.hbm [shape: f32[1,1,128], index: 2, kind: output, shape index: {}]
  %s3 = sld [smem:[#allocation0]]
  $region30: #{tpu_custom_call.1} parent=0
    _
  %s5 = ssub.s32 1, %s3
  %s6 = scalar_select 0, %s5, %s3
  $region1: #{tpu_custom_call.1} parent=0
    #allocation2 [shape = 'u8[8192]{0}', space=vmem, size = 0x2000, scoped, tag = 'input window, operand 0, single buffered']
    #allocation3 [shape = 's32[1]{0}', space=sflag, size = 0x4, scoped, tag = 'scoped memory for tpu_custom_call.1']
    #allocation4 [shape = 's32[1]{0}', space=sflag, size = 0x4, scoped, tag = 'scoped memory for tpu_custom_call.1']
    #allocation5 [shape = 'u8[8192]{0}', space=vmem, size = 0x2000, scoped, tag = 'input window, operand 1, single buffered']
    #allocation6 [shape = 's32[1]{0}', space=sflag, size = 0x4, scoped, tag = 'scoped memory for tpu_custom_call.1']
    #allocation7 [shape = 'u8[512]{0}', space=vmem, size = 0x400, scoped, tag = 'output window, operand 0, single buffered']
    %7 = vsyncpa [#allocation3], 0
    %8 = vsyncpa [#allocation6], 0
    %9 = vsyncpa [#allocation4], 0
    // Predicated region
    $region2: #{tpu_custom_call.1} parent=1 // pred_check
      _
    $region3: #{tpu_custom_call.1} parent=1 // pred_check_branch
      %11 = sbr.rel (0) target = $region5
    $region4: #{tpu_custom_call.1} parent=1 // pred_region
      %s12 = sadd.s32 0, 0
      %p13 = scmp.lt.s32.totalorder %s12, 0
      %s14 = scalar_select %p13, %s12, 0
      %s15 = smul.u32 2, %s14
      %s17 = ssub.s32 256, 256
      %18 = vsyncadd [#allocation3], %s17
      %s19 = smul.addr %s15, 128
      %s20 = scalar_lea.hbm %s0, %s19
      %s21 = sshll.u32 [#allocation2], 4
      %s22 = int_to_ptr.vmem [resolvable:$true] %s21
      %27 = dma.hbm_to_vmem [thread:$0]  %s20, 256, %s22, [#allocation3], 128, 128, 8
    $region5: #{tpu_custom_call.1} parent=1 // pred_fallthru
      _
    // Predicated region
    $region6: #{tpu_custom_call.1} parent=1 // pred_check
      _
    $region7: #{tpu_custom_call.1} parent=1 // pred_check_branch
      %29 = sbr.rel (0) target = $region9
    $region8: #{tpu_custom_call.1} parent=1 // pred_region
      %s30 = sadd.s32 0, 0
      %p31 = scmp.lt.s32.totalorder %s30, 0
      %s32 = scalar_select %p31, %s30, 0
      %s33 = smul.u32 2, %s32
      %s35 = ssub.s32 256, 256
      %36 = vsyncadd [#allocation6], %s35
      %s37 = smul.addr %s33, 128
      %s38 = scalar_lea.hbm %s1, %s37
      %s39 = sshll.u32 [#allocation5], 4
      %s40 = int_to_ptr.vmem [resolvable:$true] %s39
      %45 = dma.hbm_to_vmem [thread:$0]  %s38, 256, %s40, [#allocation6], 128, 128, 8
    $region9: #{tpu_custom_call.1} parent=1 // pred_fallthru
      _
    // Predicated region
    $region10: #{tpu_custom_call.1} parent=1 // pred_check
      _
    $region11: #{tpu_custom_call.1} parent=1 // pred_check_branch
      %47 = sbr.rel (0) target = $region13
    $region12: #{tpu_custom_call.1} parent=1 // pred_region
      %48 = dma.done [#allocation3], 256
    $region13: #{tpu_custom_call.1} parent=1 // pred_fallthru
      _
    // Predicated region
    $region14: #{tpu_custom_call.1} parent=1 // pred_check
      _
    $region15: #{tpu_custom_call.1} parent=1 // pred_check_branch
      %50 = sbr.rel (0) target = $region17
    $region16: #{tpu_custom_call.1} parent=1 // pred_region
      %51 = dma.done [#allocation6], 256
    $region17: #{tpu_custom_call.1} parent=1 // pred_fallthru
      _
    %s52 = sadd.s32 0, 0
    %p53 = scmp.lt.s32.totalorder %s52, 0
    %s54 = scalar_select %p53, %s52, 0
    %s55 = smul.u32 2, %s54
    %s56 = sadd.s32 0, 0
    %p57 = scmp.lt.s32.totalorder %s56, 0
    %s58 = scalar_select %p57, %s56, 0
    %s59 = smul.u32 2, %s58
    %p60 = scmp.eq.s32.totalorder 0, 0
    // Predicated region
    $region18: #{tpu_custom_call.1} parent=1 // pred_check
      %p61 = pneg %p60
    $region19: #{tpu_custom_call.1} parent=1 // pred_check_branch
      %63 = sbr.rel (%p61) target = $region21
    $region20: #{tpu_custom_call.1} parent=1 // pred_region
      %64 = vst [vmem:[#allocation7] sm:$0x1] 0.0
    $region21: #{tpu_custom_call.1} parent=1 // pred_fallthru
      _
    %v65 = vld [vmem:[#allocation2] sm:$0xff]
    %v66 = vld [vmem:[#allocation2 + $0x8] sm:$0xff]
    %v67 = vld [vmem:[#allocation5] sm:$0xff]
    %v68 = vld [vmem:[#allocation5 + $0x8] sm:$0xff]
    %v69 = vsub.f32 %v65, %v67
    %v70 = vsub.f32 %v66, %v68
    %v71 = vmul.f32 %v69, %v69
    %v72 = vmul.f32 %v70, %v70
    %v73 = vld [vmem:[#allocation7] sm:$0x1]
    %v74 = vadd.f32 %v71, %v72
    %v75 = vrot.slane %v74, 4
    %v76 = vadd.f32 %v74, %v75
    %v77 = vrot.slane %v76, 2
    %v78 = vadd.f32 %v76, %v77
    %v79 = vrot.slane %v78, 1
    %v80 = vadd.f32 %v78, %v79
    %v81 = vadd.f32 %v73, %v80
    %82 = vst [vmem:[#allocation7] sm:$0x1] %v81
    // Predicated region
    $region22: #{tpu_custom_call.1} parent=1 // pred_check
      _
    $region23: #{tpu_custom_call.1} parent=1 // pred_check_branch
      %84 = sbr.rel (0) target = $region25
    $region24: #{tpu_custom_call.1} parent=1 // pred_region
      %s86 = ssub.s32 16, 16
      %87 = vsyncadd [#allocation4], %s86
      %s89 = sshll.u32 [#allocation7], 4
      %s90 = int_to_ptr.vmem [resolvable:$true] %s89
      %92 = dma.vmem_to_hbm [thread:$0]  %s90, 16, %s2, [#allocation4]
    $region25: #{tpu_custom_call.1} parent=1 // pred_fallthru
      _
    // Predicated region
    $region26: #{tpu_custom_call.1} parent=1 // pred_check
      _
    $region27: #{tpu_custom_call.1} parent=1 // pred_check_branch
      %94 = sbr.rel (0) target = $region29
    $region28: #{tpu_custom_call.1} parent=1 // pred_region
      %95 = dma.done [#allocation4], 16
    $region29: #{tpu_custom_call.1} parent=1 // pred_fallthru
      _
    %96 = vsyncpa [#allocation3], 1
    %97 = vsyncpa [#allocation6], 1
    %98 = vsyncpa [#allocation4], 1

</llo_original>
